<compile_context>
chip_gen: v6e
topology: v6e:2x2x1
jax: 0.10.0
libtpu: 0.0.40
codegen_flags: <defaults>
</compile_context>

<pallas_src>
import jax
import jax.numpy as jnp
from jax.experimental import pallas as pl
from jax.experimental.pallas import tpu as pltpu


def _round_up(x, m):
    return ((x + m - 1) // m) * m


def _cdiv(a, b):
    return (a + b - 1) // b


def _mlp_kernel(x_ref, w1_ref, b1_ref, w2_ref, b2_ref, o_ref):
    """Fused fc1 -> ReLU6 -> fc2 on one (batch, spatial-tile) block.

    x_ref : (1, Cin, TS)   input pixels, channels on sublanes, H*W on lanes
    w1_ref: (Chid, Cin)    resident fc1 weight
    b1_ref: (Chid, 1)      resident fc1 bias (f32)
    w2_ref: (Cout, Chid)   resident fc2 weight
    b2_ref: (Cout, 1)      resident fc2 bias (f32)
    o_ref : (1, Cout, TS)  output pixels (already NCHW layout)
    """
    w1 = w1_ref[...]
    w2 = w2_ref[...]
    x = x_ref[0].astype(w1.dtype)                                # MXU input dtype
    h = jnp.dot(w1, x, preferred_element_type=jnp.float32)       # (Chid, TS) f32 acc
    h = jnp.clip(h + b1_ref[...], 0.0, 6.0)                      # bias + ReLU6 (f32)
    out = jnp.dot(w2, h.astype(w2.dtype), preferred_element_type=jnp.float32)
    o_ref[0] = (out + b2_ref[...]).astype(o_ref.dtype)


def pack_mlp_params(w1, b1, w2, b2, compute_dtype=jnp.bfloat16):
    """Pack PyTorch-layout Conv2d(1x1) params once into kernel-friendly layout.

    w1: (Chid, Cin, 1, 1), b1: (Chid,), w2: (Cout, Chid, 1, 1), b2: (Cout,).
    Weights are cast to `compute_dtype` (bf16 by default: the native MXU dtype
    on v5e/v6e/v7x); biases stay f32 for the f32 epilogue.
    """
    Chid, Cin = w1.shape[0], w1.shape[1]
    Cout = w2.shape[0]
    w1k = w1.reshape(Chid, Cin).astype(compute_dtype)
    w2k = w2.reshape(Cout, Chid).astype(compute_dtype)
    b1k = b1.reshape(Chid, 1).astype(jnp.float32)
    b2k = b2.reshape(Cout, 1).astype(jnp.float32)
    return w1k, b1k, w2k, b2k


def mlp_forward(x, params, *, drop=0.0, tile_s=2048):
    """Mlp forward: fc1 (1x1 conv) -> ReLU6 -> fc2 (1x1 conv). NCHW in/out.

    x: (B, Cin, H, W); params: output of pack_mlp_params (pre-packed once).
    """
    # TODO(synk): train-mode stochastic dropout (p > 0) is not implemented;
    # the module default p=0.0 / eval mode is an identity, enforced here.
    assert drop == 0.0, "only drop=0.0 (identity dropout) is supported"
    w1k, b1k, w2k, b2k = params
    B, Cin, H, W = x.shape
    Chid = w1k.shape[0]
    Cout = w2k.shape[0]
    HW = H * W

    # Spatial (lane) tiling: big tiles amortize the ~0.35us per-step overhead,
    # but keep >= 4 total grid steps when possible so v7x's two TensorCores
    # both get work from the "parallel" grid axes (no-op on v5e/v6e).
    hw_pad128 = _round_up(HW, 128)
    ts = max((min(tile_s, hw_pad128) // 128) * 128, 128)
    while ts > 128 and B * _cdiv(hw_pad128, ts) < 4:
        ts -= 128
    HWp = _round_up(HW, ts)

    xf = x.reshape(B, Cin, HW)           # NCHW: channels on sublanes, H*W on lanes
    if HWp != HW:                        # only pad spatial axis when needed
        xf = jnp.pad(xf, ((0, 0), (0, 0), (0, HWp - HW)))
    grid = (B, HWp // ts)

    in_bytes = jnp.dtype(x.dtype).itemsize
    w_bytes = jnp.dtype(w1k.dtype).itemsize

    # VMEM budget: double-buffer every operand (Pallas default) plus the f32
    # hidden-activation scratch; 2x headroom, capped at 48 MiB (< v7x's 64 MiB).
    vmem_need = (2 * Cin * ts * in_bytes                     # x tile (2 bufs)
                 + 2 * Cout * ts * in_bytes                  # out tile (2 bufs)
                 + 2 * (Chid * Cin + Cout * Chid) * w_bytes  # resident weights
                 + 2 * (Chid + Cout) * 4                     # biases
                 + Chid * ts * 4)                            # hidden scratch
    vmem_limit = int(min(max(2 * vmem_need, 16 * 1024 * 1024), 48 * 1024 * 1024))

    cost = pl.CostEstimate(
        flops=2 * B * HW * (Cin * Chid + Chid * Cout),
        transcendentals=0,
        bytes_accessed=(B * HW * (Cin + Cout) * in_bytes
                        + (Chid * Cin + Cout * Chid) * w_bytes
                        + (Chid + Cout) * 4),
    )

    out = pl.pallas_call(
        _mlp_kernel,
        out_shape=jax.ShapeDtypeStruct((B, Cout, HWp), x.dtype),
        grid=grid,
        in_specs=[
            pl.BlockSpec((1, Cin, ts), lambda b, j: (b, 0, j)),   # streamed pixels
            pl.BlockSpec((Chid, Cin), lambda b, j: (0, 0)),       # resident fc1 W
            pl.BlockSpec((Chid, 1), lambda b, j: (0, 0)),         # resident fc1 b
            pl.BlockSpec((Cout, Chid), lambda b, j: (0, 0)),      # resident fc2 W
            pl.BlockSpec((Cout, 1), lambda b, j: (0, 0)),         # resident fc2 b
        ],
        out_specs=pl.BlockSpec((1, Cout, ts), lambda b, j: (b, 0, j)),
        compiler_params=pltpu.CompilerParams(
            dimension_semantics=("parallel", "parallel"),
            vmem_limit_bytes=vmem_limit,
        ),
        cost_estimate=cost,
    )(xf, w1k, b1k, w2k, b2k)

    if HWp != HW:
        out = out[:, :, :HW]
    return out.reshape(B, Cout, H, W)


if __name__ == "__main__":
    key = jax.random.PRNGKey(0)
    kx, kw1, kb1, kw2, kb2 = jax.random.split(key, 5)

    # Mlp(in_features=32, hidden_features=64, out_features=32), ReLU6, drop=0.0
    B, Cin, H, W = 2, 32, 16, 16
    Chid, Cout = 64, 32

    x = jax.random.normal(kx, (B, Cin, H, W), dtype=jnp.float32)
    w1 = jax.random.normal(kw1, (Chid, Cin, 1, 1), dtype=jnp.float32) * 0.1
    b1 = jax.random.normal(kb1, (Chid,), dtype=jnp.float32) * 0.1
    w2 = jax.random.normal(kw2, (Cout, Chid, 1, 1), dtype=jnp.float32) * 0.1
    b2 = jax.random.normal(kb2, (Cout,), dtype=jnp.float32) * 0.1

    # Pure-JAX reference (same math as the PyTorch module at drop=0 / eval).
    w1m = w1.reshape(Chid, Cin)
    w2m = w2.reshape(Cout, Chid)
    ref_h = jnp.einsum("bchw,oc->bohw", x, w1m) + b1.reshape(1, Chid, 1, 1)
    ref_h = jnp.clip(ref_h, 0.0, 6.0)
    ref = jnp.einsum("bchw,oc->bohw", ref_h, w2m) + b2.reshape(1, Cout, 1, 1)

    # f32 weight path (tight numerical check).
    params_f32 = pack_mlp_params(w1, b1, w2, b2, compute_dtype=jnp.float32)
    out_f32 = jax.block_until_ready(mlp_forward(x, params_f32))
    assert out_f32.shape == (B, Cout, H, W)
    assert jnp.allclose(out_f32, ref, atol=2e-3, rtol=2e-3)

    # Default path: bf16 MXU inputs (f32 accumulation / f32 epilogue inside).
    params_bf16 = pack_mlp_params(w1, b1, w2, b2)
    out_bf16 = jax.block_until_ready(mlp_forward(x, params_bf16))
    assert out_bf16.shape == (B, Cout, H, W)
    assert jnp.allclose(out_bf16, ref, atol=5e-2, rtol=5e-2)

    print("KERNEL_OK")
</pallas_src>

<mosaic_0001>
module attributes {stable_mosaic.version = 11 : i64} {
  func.func @_mlp_kernel(%arg0: i32, %arg1: i32, %arg2: memref<1x32x128xf32, #tpu.memory_space<vmem>>, %arg3: memref<64x32xf32, #tpu.memory_space<vmem>>, %arg4: memref<64x1xf32, #tpu.memory_space<vmem>>, %arg5: memref<32x64xf32, #tpu.memory_space<vmem>>, %arg6: memref<32x1xf32, #tpu.memory_space<vmem>>, %arg7: memref<1x32x128xf32, #tpu.memory_space<vmem>>) attributes {dimension_semantics = [#tpu.dimension_semantics<parallel>, #tpu.dimension_semantics<parallel>], iteration_bounds = array<i64: 2, 2>, scalar_prefetch = 0 : i64, scratch_operands = 0 : i64, tpu.core_type = #tpu.core_type<tc>, window_params = [{transform_indices = @transform_0, window_bounds = array<i64: 1, 32, 128>}, {pipeline_mode = #tpu.pipeline_mode<synchronous>, transform_indices = @transform_1, window_bounds = array<i64: 64, 32>}, {pipeline_mode = #tpu.pipeline_mode<synchronous>, transform_indices = @transform_2, window_bounds = array<i64: 64, 1>}, {pipeline_mode = #tpu.pipeline_mode<synchronous>, transform_indices = @transform_3, window_bounds = array<i64: 32, 64>}, {pipeline_mode = #tpu.pipeline_mode<synchronous>, transform_indices = @transform_4, window_bounds = array<i64: 32, 1>}, {transform_indices = @transform_5, window_bounds = array<i64: 1, 32, 128>}]} {
    %c0 = arith.constant 0 : index
    %c0_0 = arith.constant 0 : index
    %0 = vector.load %arg3[%c0, %c0_0] : memref<64x32xf32, #tpu.memory_space<vmem>>, vector<64x32xf32>
    %c0_1 = arith.constant 0 : index
    %c0_2 = arith.constant 0 : index
    %1 = vector.load %arg5[%c0_1, %c0_2] : memref<32x64xf32, #tpu.memory_space<vmem>>, vector<32x64xf32>
    %c0_3 = arith.constant 0 : index
    %c0_4 = arith.constant 0 : index
    %c0_5 = arith.constant 0 : index
    %2 = vector.load %arg2[%c0_3, %c0_4, %c0_5] : memref<1x32x128xf32, #tpu.memory_space<vmem>>, vector<1x32x128xf32>
    %3 = vector.shape_cast %2 : vector<1x32x128xf32> to vector<32x128xf32>
    %cst = arith.constant dense<0.000000e+00> : vector<64x128xf32>
    %4 = tpu.matmul %0, %3, %cst {dimension_numbers = #tpu.dot_dimension_numbers<[1], [0], [0], [1], [0, 0, 1, 1], [], []>} : vector<64x32xf32>, vector<32x128xf32>, vector<64x128xf32> -> vector<64x128xf32>
    %c0_6 = arith.constant 0 : index
    %c0_7 = arith.constant 0 : index
    %5 = vector.load %arg4[%c0_6, %c0_7] : memref<64x1xf32, #tpu.memory_space<vmem>>, vector<64x1xf32>
    %6 = vector.broadcast %5 : vector<64x1xf32> to vector<64x128xf32>
    %7 = arith.addf %4, %6 : vector<64x128xf32>
    %cst_8 = arith.constant 0.000000e+00 : f32
    %cst_9 = arith.constant 6.000000e+00 : f32
    %8 = vector.broadcast %cst_8 : f32 to vector<64x128xf32>
    %9 = arith.maximumf %8, %7 : vector<64x128xf32>
    %10 = vector.broadcast %cst_9 : f32 to vector<64x128xf32>
    %11 = arith.minimumf %10, %9 : vector<64x128xf32>
    %cst_10 = arith.constant dense<0.000000e+00> : vector<32x128xf32>
    %12 = tpu.matmul %1, %11, %cst_10 {dimension_numbers = #tpu.dot_dimension_numbers<[1], [0], [0], [1], [0, 0, 1, 1], [], []>} : vector<32x64xf32>, vector<64x128xf32>, vector<32x128xf32> -> vector<32x128xf32>
    %c0_11 = arith.constant 0 : index
    %c0_12 = arith.constant 0 : index
    %13 = vector.load %arg6[%c0_11, %c0_12] : memref<32x1xf32, #tpu.memory_space<vmem>>, vector<32x1xf32>
    %14 = vector.broadcast %13 : vector<32x1xf32> to vector<32x128xf32>
    %15 = arith.addf %12, %14 : vector<32x128xf32>
    %c0_13 = arith.constant 0 : index
    %c0_14 = arith.constant 0 : index
    %c0_15 = arith.constant 0 : index
    %16 = vector.load %arg7[%c0_13, %c0_14, %c0_15] : memref<1x32x128xf32, #tpu.memory_space<vmem>>, vector<1x32x128xf32>
    %17 = vector.shape_cast %16 : vector<1x32x128xf32> to vector<32x128xf32>
    %18 = vector.shape_cast %15 : vector<32x128xf32> to vector<1x32x128xf32>
    tpu.vector_store %arg7[%c0_13, %c0_14, %c0_15], %18 {strides = array<i32>} : memref<1x32x128xf32, #tpu.memory_space<vmem>>, vector<1x32x128xf32>,
    return
  }
  func.func @transform_0(%arg0: i32, %arg1: i32) -> (i32, i32, i32) {
    %c0_i32 = arith.constant 0 : i32
    %c0_i32_0 = arith.constant 0 : i32
    return %arg0, %c0_i32, %arg1 : i32, i32, i32
  }
  func.func @transform_1(%arg0: i32, %arg1: i32) -> (i32, i32) {
    %c0_i32 = arith.constant 0 : i32
    %c0_i32_0 = arith.constant 0 : i32
    %c0_i32_1 = arith.constant 0 : i32
    return %c0_i32, %c0_i32_0 : i32, i32
  }
  func.func @transform_2(%arg0: i32, %arg1: i32) -> (i32, i32) {
    %c0_i32 = arith.constant 0 : i32
    %c0_i32_0 = arith.constant 0 : i32
    %c0_i32_1 = arith.constant 0 : i32
    return %c0_i32, %c0_i32_0 : i32, i32
  }
  func.func @transform_3(%arg0: i32, %arg1: i32) -> (i32, i32) {
    %c0_i32 = arith.constant 0 : i32
    %c0_i32_0 = arith.constant 0 : i32
    %c0_i32_1 = arith.constant 0 : i32
    return %c0_i32, %c0_i32_0 : i32, i32
  }
  func.func @transform_4(%arg0: i32, %arg1: i32) -> (i32, i32) {
    %c0_i32 = arith.constant 0 : i32
    %c0_i32_0 = arith.constant 0 : i32
    %c0_i32_1 = arith.constant 0 : i32
    return %c0_i32, %c0_i32_0 : i32, i32
  }
  func.func @transform_5(%arg0: i32, %arg1: i32) -> (i32, i32, i32) {
    %c0_i32 = arith.constant 0 : i32
    %c0_i32_0 = arith.constant 0 : i32
    return %arg0, %c0_i32, %arg1 : i32, i32, i32
  }
}

</mosaic_0001>

<llo_original>
// kernel: tpu_custom_call.1
$region0: #{tpu_custom_call.1}
  #allocation0 [shape = 'u32[]', space=smem, size = 0x4, offset = 0x4, fixed_abs, tag = 'smem constant byte address 0x4 - core index']
  #allocation1 [shape = 'u32[144,128]{1,0:T(1,128)}', space=vmem, size = 0x12000, scoped, tag = 'internal scratch']
  %s0 = inlined_call_operand.vmem [shape: f32[2,32,256], index: 0, kind: input, shape index: {}]
  %s1 = inlined_call_operand.vmem [shape: f32[64,32], index: 1, kind: input, shape index: {}]
  %s2 = inlined_call_operand.vmem [shape: f32[64,1], index: 2, kind: input, shape index: {}]
  %s3 = inlined_call_operand.vmem [shape: f32[32,64], index: 3, kind: input, shape index: {}]
  %s4 = inlined_call_operand.vmem [shape: f32[32,1], index: 4, kind: input, shape index: {}]
  %s5 = inlined_call_operand.hbm [shape: f32[2,32,256], index: 5, kind: output, shape index: {}]
  %s6 = sld [smem:[#allocation0]]
  $region91: #{tpu_custom_call.1} parent=0
    _
  %s8 = ssub.s32 1, %s6
  %s9 = scalar_select 0, %s8, %s6
  $region1: #{tpu_custom_call.1} parent=0
    #allocation2 [shape = 'u8[32768]{0}', space=vmem, size = 0x8000, scoped, tag = 'input window, operand 0']
    #allocation3 [shape = 'u8[32768]{0}', space=vmem, size = 0x8000, scoped, tag = 'output window, operand 0']
    #allocation4 [shape = 's32[2]{0}', space=sflag, size = 0x8, scoped, tag = 'scoped memory for tpu_custom_call.1']
    %10 = vsyncpa [#allocation4], 0
    %s11 = scalar_lea.sflag [#allocation4], 1
    %12 = vsyncpa %s11, 0
    loop: start=0, step=1, limit=6
    $region2: #{tpu_custom_call.1} parent=1 // loop_pre_header
      _
    $region3: #{tpu_custom_call.1} parent=1 // loop_header
      %s14 = sphi 0, %s18
      %p15 = scmp.ge.s32.totalorder %s14, 6
      %s21 = sphi 0, %s33
      %s22 = sphi 0, %s29
      %s23 = sphi 0, %s21
      %s24 = sphi 0, %s22
      %s25 = sphi 0, %s23
      %s26 = sphi 0, %s24
      %s38 = sphi 0, %s40
      %s41 = sphi 0, %s38
      %s42 = sphi 0, %s41
      %s58 = sphi 0, %s42
      %s62 = sphi 0, %s62
      %s64 = sphi 0, %s62
      %s65 = sphi 0, %s64
      %s79 = sphi 0, %s65
      %s83 = sphi 0, %s83
      %s85 = sphi 0, %s83
      %s86 = sphi 0, %s85
      %s100 = sphi 0, %s86
      %s104 = sphi 0, %s104
      %s106 = sphi 0, %s104
      %s107 = sphi 0, %s106
      %s121 = sphi 0, %s107
      %s125 = sphi 0, %s125
      %s127 = sphi 0, %s125
      %s128 = sphi 0, %s127
      %s142 = sphi 0, %s128
      %s150 = sphi 0, %s152
      %s153 = sphi 0, %s150
      %s154 = sphi 0, %s153
      %s170 = sphi 0, %s154
    $region4: #{tpu_custom_call.1} parent=1 // loop_header_branch
      %17 = sbr.rel (%p15) target = $region8
    $region5: #{tpu_custom_call.1} parent=1 // loop_body
      %s19 = ssub.s32 %s14, 1
      %s20 = ssub.s32 %s14, 2
      %s27 = sadd.s32 1, %s22
      %p28 = scmp.ge.s32.totalorder %s27, 2
      %s29 = scalar_select %p28, 0, %s27
      %s30 = sadd.s32 1, %s21
      %s31 = scalar_select %p28, %s30, %s21
      %p32 = scmp.ge.s32.totalorder %s31, 2
      %s33 = scalar_select %p32, 0, %s31
      %s34 = ssub.s32 %s21, %s33
      %s35 = ssub.s32 %s22, %s29
      %s36 = sor.u32 %s34, %s35
      %p37 = scmp.eq.s32.totalorder %s36, 0
      %s39 = sadd.s32 %s38, 1
      %s40 = scalar_select %p37, %s38, %s39
      %p43 = pneg %p37
      %p44 = scmp.eq.s32.totalorder %s14, 3
      %p45 = por %p43, %p44
      %p46 = scmp.ne.s32.totalorder %s38, %s41
      %p47 = scmp.eq.s32.totalorder %s14, 0
      %p48 = por %p46, %p47
      %p49 = scmp.ne.s32.totalorder %s38, %s41
      %p50 = scmp.eq.s32.totalorder %s19, 3
      %p51 = por %p49, %p50
      %p52 = scmp.ne.s32.totalorder %s41, %s42
      %p53 = scmp.eq.s32.totalorder %s19, 0
      %p54 = por %p52, %p53
      %p55 = scmp.ne.s32.totalorder %s41, %s42
      %p56 = scmp.eq.s32.totalorder %s20, 3
      %p57 = por %p55, %p56
      %p59 = scmp.ne.s32.totalorder %s42, %s58
      %p60 = scmp.eq.s32.totalorder %s20, 0
      %p61 = por %p59, %p60
      %s63 = sadd.s32 %s62, 1
      %p66 = scmp.eq.s32.totalorder %s14, 3
      %p67 = scmp.ne.s32.totalorder %s62, %s64
      %p68 = scmp.eq.s32.totalorder %s14, 0
      %p69 = por %p67, %p68
      %p70 = scmp.ne.s32.totalorder %s62, %s64
      %p71 = scmp.eq.s32.totalorder %s19, 3
      %p72 = por %p70, %p71
      %p73 = scmp.ne.s32.totalorder %s64, %s65
      %p74 = scmp.eq.s32.totalorder %s19, 0
      %p75 = por %p73, %p74
      %p76 = scmp.ne.s32.totalorder %s64, %s65
      %p77 = scmp.eq.s32.totalorder %s20, 3
      %p78 = por %p76, %p77
      %p80 = scmp.ne.s32.totalorder %s65, %s79
      %p81 = scmp.eq.s32.totalorder %s20, 0
      %p82 = por %p80, %p81
      %s84 = sadd.s32 %s83, 1
      %p87 = scmp.eq.s32.totalorder %s14, 3
      %p88 = scmp.ne.s32.totalorder %s83, %s85
      %p89 = scmp.eq.s32.totalorder %s14, 0
      %p90 = por %p88, %p89
      %p91 = scmp.ne.s32.totalorder %s83, %s85
      %p92 = scmp.eq.s32.totalorder %s19, 3
      %p93 = por %p91, %p92
      %p94 = scmp.ne.s32.totalorder %s85, %s86
      %p95 = scmp.eq.s32.totalorder %s19, 0
      %p96 = por %p94, %p95
      %p97 = scmp.ne.s32.totalorder %s85, %s86
      %p98 = scmp.eq.s32.totalorder %s20, 3
      %p99 = por %p97, %p98
      %p101 = scmp.ne.s32.totalorder %s86, %s100
      %p102 = scmp.eq.s32.totalorder %s20, 0
      %p103 = por %p101, %p102
      %s105 = sadd.s32 %s104, 1
      %p108 = scmp.eq.s32.totalorder %s14, 3
      %p109 = scmp.ne.s32.totalorder %s104, %s106
      %p110 = scmp.eq.s32.totalorder %s14, 0
      %p111 = por %p109, %p110
      %p112 = scmp.ne.s32.totalorder %s104, %s106
      %p113 = scmp.eq.s32.totalorder %s19, 3
      %p114 = por %p112, %p113
      %p115 = scmp.ne.s32.totalorder %s106, %s107
      %p116 = scmp.eq.s32.totalorder %s19, 0
      %p117 = por %p115, %p116
      %p118 = scmp.ne.s32.totalorder %s106, %s107
      %p119 = scmp.eq.s32.totalorder %s20, 3
      %p120 = por %p118, %p119
      %p122 = scmp.ne.s32.totalorder %s107, %s121
      %p123 = scmp.eq.s32.totalorder %s20, 0
      %p124 = por %p122, %p123
      %s126 = sadd.s32 %s125, 1
      %p129 = scmp.eq.s32.totalorder %s14, 3
      %p130 = scmp.ne.s32.totalorder %s125, %s127
      %p131 = scmp.eq.s32.totalorder %s14, 0
      %p132 = por %p130, %p131
      %p133 = scmp.ne.s32.totalorder %s125, %s127
      %p134 = scmp.eq.s32.totalorder %s19, 3
      %p135 = por %p133, %p134
      %p136 = scmp.ne.s32.totalorder %s127, %s128
      %p137 = scmp.eq.s32.totalorder %s19, 0
      %p138 = por %p136, %p137
      %p139 = scmp.ne.s32.totalorder %s127, %s128
      %p140 = scmp.eq.s32.totalorder %s20, 3
      %p141 = por %p139, %p140
      %p143 = scmp.ne.s32.totalorder %s128, %s142
      %p144 = scmp.eq.s32.totalorder %s20, 0
      %p145 = por %p143, %p144
      %s146 = ssub.s32 %s21, %s33
      %s147 = ssub.s32 %s22, %s29
      %s148 = sor.u32 %s146, %s147
      %p149 = scmp.eq.s32.totalorder %s148, 0
      %s151 = sadd.s32 %s150, 1
      %s152 = scalar_select %p149, %s150, %s151
      %p155 = pneg %p149
      %p156 = scmp.eq.s32.totalorder %s14, 3
      %p157 = por %p155, %p156
      %p158 = scmp.ne.s32.totalorder %s150, %s153
      %p159 = scmp.eq.s32.totalorder %s14, 0
      %p160 = por %p158, %p159
      %p161 = scmp.ne.s32.totalorder %s150, %s153
      %p162 = scmp.eq.s32.totalorder %s19, 3
      %p163 = por %p161, %p162
      %p164 = scmp.ne.s32.totalorder %s153, %s154
      %p165 = scmp.eq.s32.totalorder %s19, 0
      %p166 = por %p164, %p165
      %p167 = scmp.ne.s32.totalorder %s153, %s154
      %p168 = scmp.eq.s32.totalorder %s20, 3
      %p169 = por %p167, %p168
      %p171 = scmp.ne.s32.totalorder %s154, %s170
      %p172 = scmp.eq.s32.totalorder %s20, 0
      %p173 = por %p171, %p172
      %p174 = scmp.le.s32.totalorder 1, %s14
      %p175 = scmp.lt.s32.totalorder %s14, 5
      %p176 = pnand %p174, %p175
      %p177 = pneg %p176
      // Predicated region
      $region9: #{tpu_custom_call.1} parent=5 // pred_check
        _
      $region10: #{tpu_custom_call.1} parent=5 // pred_check_branch
        %179 = sbr.rel (%p176) target = $region12
      $region11: #{tpu_custom_call.1} parent=5 // pred_region
        %s180 = ssub.s32 %s14, 1
        // Predicated region
        $region13: #{tpu_custom_call.1} parent=11 // pred_check
          %p181 = pneg %p75
        $region14: #{tpu_custom_call.1} parent=11 // pred_check_branch
          %183 = sbr.rel (%p181) target = $region16
        $region15: #{tpu_custom_call.1} parent=11 // pred_region
          _
        $region16: #{tpu_custom_call.1} parent=11 // pred_fallthru
          _
        // Predicated region
        $region17: #{tpu_custom_call.1} parent=11 // pred_check
          %p184 = pneg %p96
        $region18: #{tpu_custom_call.1} parent=11 // pred_check_branch
          %186 = sbr.rel (%p184) target = $region20
        $region19: #{tpu_custom_call.1} parent=11 // pred_region
          _
        $region20: #{tpu_custom_call.1} parent=11 // pred_fallthru
          _
        // Predicated region
        $region21: #{tpu_custom_call.1} parent=11 // pred_check
          %p187 = pneg %p117
        $region22: #{tpu_custom_call.1} parent=11 // pred_check_branch
          %189 = sbr.rel (%p187) target = $region24
        $region23: #{tpu_custom_call.1} parent=11 // pred_region
          _
        $region24: #{tpu_custom_call.1} parent=11 // pred_fallthru
          _
        // Predicated region
        $region25: #{tpu_custom_call.1} parent=11 // pred_check
          %p190 = pneg %p138
        $region26: #{tpu_custom_call.1} parent=11 // pred_check_branch
          %192 = sbr.rel (%p190) target = $region28
        $region27: #{tpu_custom_call.1} parent=11 // pred_region
          _
        $region28: #{tpu_custom_call.1} parent=11 // pred_fallthru
          _
      $region12: #{tpu_custom_call.1} parent=5 // pred_fallthru
        _
      %p193 = scmp.lt.s32.totalorder %s14, 4
      // Predicated region
      $region29: #{tpu_custom_call.1} parent=5 // pred_check
        %p194 = pneg %p193
      $region30: #{tpu_custom_call.1} parent=5 // pred_check_branch
        %196 = sbr.rel (%p194) target = $region32
      $region31: #{tpu_custom_call.1} parent=5 // pred_region
        // Predicated region
        $region33: #{tpu_custom_call.1} parent=31 // pred_check
          %p197 = pneg %p48
        $region34: #{tpu_custom_call.1} parent=31 // pred_check_branch
          %199 = sbr.rel (%p197) target = $region36
        $region35: #{tpu_custom_call.1} parent=31 // pred_region
          %s200 = sand.u32 %s38, 1
          %s201 = sand.u32 %s38, 1
          %s202 = smul.addr %s201, 32
          %s203 = scalar_lea.vmem [#allocation2], %s202
          %s204 = smul.addr %s21, 8
          %s205 = sadd.s32 %s22, %s204
          %s206 = smul.addr %s205, 8
          %s207 = scalar_lea.vmem %s0, %s206
          // Predicated region
          $region37: #{tpu_custom_call.1} parent=35 // pred_check
            _
          $region38: #{tpu_custom_call.1} parent=35 // pred_check_branch
            %209 = sbr.rel (0) target = $region40
          $region39: #{tpu_custom_call.1} parent=35 // pred_region
            // Predicated region
            $region41: #{tpu_custom_call.1} parent=39 // pred_check
              _
            $region42: #{tpu_custom_call.1} parent=39 // pred_check_branch
              %211 = sbr.rel (0) target = $region44
            $region43: #{tpu_custom_call.1} parent=39 // pred_region
              // Predicated region
              $region56: #{tpu_custom_call.1} parent=43 // pred_check
                _
              $region57: #{tpu_custom_call.1} parent=43 // pred_check_branch
                %233 = sbr.rel (0) target = $region59
              $region58: #{tpu_custom_call.1} parent=43 // pred_region
                loop: start=0, step=1, limit=1
                $region60: #{tpu_custom_call.1} parent=58 // loop_pre_header
                  _
                $region61: #{tpu_custom_call.1} parent=58 // loop_header
                  %s235 = sphi 0, %s239
                  %p236 = scmp.ge.s32.totalorder %s235, 1
                  %s240 = sphi %s207, %s207
                  %s241 = sphi %s203, %s203
                $region62: #{tpu_custom_call.1} parent=58 // loop_header_branch
                  %238 = sbr.rel (%p236) target = $region66
                $region63: #{tpu_custom_call.1} parent=58 // loop_body
                  %v242 = vld [vmem:[%s240] sm:$0xff]
                  %243 = vst [vmem:[%s241] sm:$0xff] %v242
                  %v244 = vld [vmem:[%s240 + $0x10] sm:$0xff]
                  %245 = vst [vmem:[%s241 + $0x8] sm:$0xff] %v244
                  %v246 = vld [vmem:[%s240 + $0x20] sm:$0xff]
                  %247 = vst [vmem:[%s241 + $0x10] sm:$0xff] %v246
                  %v248 = vld [vmem:[%s240 + $0x30] sm:$0xff]
                  %249 = vst [vmem:[%s241 + $0x18] sm:$0xff] %v248
                $region64: #{tpu_custom_call.1} parent=58 // loop_footer
                  %s239 = sadd.s32 1, %s235
                $region65: #{tpu_custom_call.1} parent=58 // loop_footer_branch
                  %234 = sbr.rel target = $region61
                $region66: #{tpu_custom_call.1} parent=58 // loop_exit
                  _
              $region59: #{tpu_custom_call.1} parent=43 // pred_fallthru
                _
              // Predicated region
              $region67: #{tpu_custom_call.1} parent=43 // pred_check
                _
              $region68: #{tpu_custom_call.1} parent=43 // pred_check_branch
                %251 = sbr.rel target = $region70
              $region69: #{tpu_custom_call.1} parent=43 // pred_region
                _
              $region70: #{tpu_custom_call.1} parent=43 // pred_fallthru
                _
            $region44: #{tpu_custom_call.1} parent=39 // pred_fallthru
              _
            // Predicated region
            $region45: #{tpu_custom_call.1} parent=39 // pred_check
              _
            $region46: #{tpu_custom_call.1} parent=39 // pred_check_branch
              %213 = sbr.rel target = $region48
            $region47: #{tpu_custom_call.1} parent=39 // pred_region
              %s215 = ssub.s32 256, 1
              loop: start=0, step=1, limit=1
              $region49: #{tpu_custom_call.1} parent=47 // loop_pre_header
                _
              $region50: #{tpu_custom_call.1} parent=47 // loop_header
                %s217 = sphi 0, %s221
                %p218 = scmp.ge.s32.totalorder %s217, 1
                %s222 = sphi %s207, %s207
                %s223 = sphi %s203, %s203
              $region51: #{tpu_custom_call.1} parent=47 // loop_header_branch
                %220 = sbr.rel (%p218) target = $region55
              $region52: #{tpu_custom_call.1} parent=47 // loop_body
                %v224 = vld [vmem:[%s222] sm:%s215]
                %225 = vst [vmem:[%s223] sm:%s215] %v224
                %v226 = vld [vmem:[%s222 + $0x10] sm:%s215]
                %227 = vst [vmem:[%s223 + $0x8] sm:%s215] %v226
                %v228 = vld [vmem:[%s222 + $0x20] sm:%s215]
                %229 = vst [vmem:[%s223 + $0x10] sm:%s215] %v228
                %v230 = vld [vmem:[%s222 + $0x30] sm:%s215]
                %231 = vst [vmem:[%s223 + $0x18] sm:%s215] %v230
              $region53: #{tpu_custom_call.1} parent=47 // loop_footer
                %s221 = sadd.s32 1, %s217
              $region54: #{tpu_custom_call.1} parent=47 // loop_footer_branch
                %216 = sbr.rel target = $region50
              $region55: #{tpu_custom_call.1} parent=47 // loop_exit
                _
            $region48: #{tpu_custom_call.1} parent=39 // pred_fallthru
              _
          $region40: #{tpu_custom_call.1} parent=35 // pred_fallthru
            _
          %252 = vnop
        $region36: #{tpu_custom_call.1} parent=31 // pred_fallthru
          _
      $region32: #{tpu_custom_call.1} parent=5 // pred_fallthru
        _
      %p253 = scmp.le.s32.totalorder 1, %s14
      %p254 = scmp.lt.s32.totalorder %s14, 5
      %p255 = pnand %p253, %p254
      %p256 = pneg %p255
      // Predicated region
      $region71: #{tpu_custom_call.1} parent=5 // pred_check
        _
      $region72: #{tpu_custom_call.1} parent=5 // pred_check_branch
        %258 = sbr.rel (%p255) target = $region74
      $region73: #{tpu_custom_call.1} parent=5 // pred_region
        %s259 = ssub.s32 %s14, 1
        %s260 = sand.u32 %s41, 1
        %s261 = sand.u32 %s41, 1
        %s262 = smul.addr %s261, 32
        %s263 = scalar_lea.vmem [#allocation2], %s262
        // Predicated region
        $region75: #{tpu_custom_call.1} parent=73 // pred_check
          %p264 = pneg %p54
        $region76: #{tpu_custom_call.1} parent=73 // pred_check_branch
          %266 = sbr.rel (%p264) target = $region78
        $region77: #{tpu_custom_call.1} parent=73 // pred_region
          _
        $region78: #{tpu_custom_call.1} parent=73 // pred_fallthru
          _
        %s267 = sand.u32 %s41, 1
        %s268 = sand.u32 %s41, 1
        %s269 = smul.addr %s268, 32
        %s270 = scalar_lea.vmem [#allocation2], %s269
        %p271 = pneg %p54
        %p272 = pneg %p51
        %p273 = pneg %p75
        %p274 = pneg %p72
        %p275 = pneg %p96
        %p276 = pneg %p93
        %p277 = pneg %p117
        %p278 = pneg %p114
        %p279 = pneg %p138
        %p280 = pneg %p135
        %p281 = pneg %p166
        %p282 = pneg %p163
        %s283 = sand.u32 %s153, 1
        %s284 = scalar_lea.sflag [#allocation4], %s283
        %s285 = sand.u32 %s153, 1
        %s286 = smul.addr %s285, 32
        %s287 = scalar_lea.vmem [#allocation3], %s286
        %v288 = vld [vmem:[%s1] sm:$0xff]
        %v289 = vld [vmem:[%s1 + $0x8] sm:$0xff]
        %v290 = vld [vmem:[%s1 + $0x10] sm:$0xff]
        %v291 = vld [vmem:[%s1 + $0x18] sm:$0xff]
        %v292 = vld [vmem:[%s1 + $0x20] sm:$0xff]
        %v293 = vld [vmem:[%s1 + $0x28] sm:$0xff]
        %v294 = vld [vmem:[%s1 + $0x30] sm:$0xff]
        %v295 = vld [vmem:[%s1 + $0x38] sm:$0xff]
        %v296 = vld [vmem:[%s3] sm:$0xff]
        %v297 = vld [vmem:[%s3 + $0x8] sm:$0xff]
        %v298 = vld [vmem:[%s3 + $0x10] sm:$0xff]
        %v299 = vld [vmem:[%s3 + $0x18] sm:$0xff]
        %v300 = vld [vmem:[%s263] sm:$0xff]
        %v301 = vld [vmem:[%s263 + $0x8] sm:$0xff]
        %v302 = vld [vmem:[%s263 + $0x10] sm:$0xff]
        %v303 = vld [vmem:[%s263 + $0x18] sm:$0xff]
        %v304 = vld [vmem:[%s2] sm:$0xff]
        %v305 = vld [vmem:[%s2 + $0x8] sm:$0xff]
        %v306 = vld [vmem:[%s2 + $0x10] sm:$0xff]
        %v307 = vld [vmem:[%s2 + $0x18] sm:$0xff]
        %v308 = vld [vmem:[%s2 + $0x20] sm:$0xff]
        %v309 = vld [vmem:[%s2 + $0x28] sm:$0xff]
        %v310 = vld [vmem:[%s2 + $0x30] sm:$0xff]
        %v311 = vld [vmem:[%s2 + $0x38] sm:$0xff]
        %313 = vset.pattern.permute.xlu0 0
        %314 = vperm.xlu0 %313, %v304
        %v315 = vpop.permute.xlu0 %314
        %318 = vset.pattern.permute.xlu0 0
        %319 = vperm.xlu0 %318, %v305
        %v320 = vpop.permute.xlu0 %319
        %323 = vset.pattern.permute.xlu0 0
        %324 = vperm.xlu0 %323, %v306
        %v325 = vpop.permute.xlu0 %324
        %328 = vset.pattern.permute.xlu0 0
        %329 = vperm.xlu0 %328, %v307
        %v330 = vpop.permute.xlu0 %329
        %333 = vset.pattern.permute.xlu0 0
        %334 = vperm.xlu0 %333, %v308
        %v335 = vpop.permute.xlu0 %334
        %338 = vset.pattern.permute.xlu0 0
        %339 = vperm.xlu0 %338, %v309
        %v340 = vpop.permute.xlu0 %339
        %343 = vset.pattern.permute.xlu0 0
        %344 = vperm.xlu0 %343, %v310
        %v345 = vpop.permute.xlu0 %344
        %348 = vset.pattern.permute.xlu0 0
        %349 = vperm.xlu0 %348, %v311
        %v350 = vpop.permute.xlu0 %349
        %vm352 = vcmask 261120
        %v354 = vsel %vm352, %v288, 0
        %v357 = vsel %vm352, %v289, 0
        %v360 = vsel %vm352, %v290, 0
        %v363 = vsel %vm352, %v291, 0
        %v366 = vsel %vm352, %v292, 0
        %v369 = vsel %vm352, %v293, 0
        %v372 = vsel %vm352, %v294, 0
        %v375 = vsel %vm352, %v295, 0
        %377 = vmatprep.subr.mxu0 0.0
        %378 = vmatpush1.msra.mxu0 0.0
        %379 = vmatprep.subr.mxu0 0.0
        %380 = vmatpush1.msra.mxu0 0.0
        %381 = vmatprep.subr.mxu0 0.0
        %382 = vmatpush1.msra.mxu0 0.0
        %383 = vmatprep.subr.mxu0 0.0
        %384 = vmatpush1.msra.mxu0 0.0
        %385 = vmatprep.subr.mxu0 0.0
        %386 = vmatpush1.msra.mxu0 0.0
        %387 = vmatprep.subr.mxu0 0.0
        %388 = vmatpush1.msra.mxu0 0.0
        %389 = vmatprep.subr.mxu0 0.0
        %390 = vmatpush1.msra.mxu0 0.0
        %391 = vmatprep.subr.mxu0 0.0
        %392 = vmatpush1.msra.mxu0 0.0
        %393 = vmatprep.subr.mxu0 0.0
        %394 = vmatpush1.msra.mxu0 0.0
        %395 = vmatprep.subr.mxu0 0.0
        %396 = vmatpush1.msra.mxu0 0.0
        %397 = vmatprep.subr.mxu0 0.0
        %398 = vmatpush1.msra.mxu0 0.0
        %399 = vmatprep.subr.mxu0 0.0
        %400 = vmatpush1.msra.mxu0 0.0
        %401 = vmatprep.subr.mxu0 0.0
        %402 = vmatpush1.msra.mxu0 %v303
        %403 = vmatprep.subr.mxu0 0.0
        %404 = vmatpush1.msra.mxu0 %v302
        %405 = vmatprep.subr.mxu0 0.0
        %406 = vmatpush1.msra.mxu0 %v301
        %407 = vmatprep.subr.mxu0 0.0
        %408 = vmatpush1.msra.mxu0 %v300
        %409 = vmatprep.subr.mxu0 0.0
        %410 = vmatpush2.msra.mxu0 0.0
        %411 = vmatprep.subr.mxu0 0.0
        %412 = vmatpush2.msra.mxu0 0.0
        %413 = vmatprep.subr.mxu0 0.0
        %414 = vmatpush2.msra.mxu0 0.0
        %415 = vmatprep.subr.mxu0 0.0
        %416 = vmatpush2.msra.mxu0 0.0
        %417 = vmatprep.subr.mxu0 0.0
        %418 = vmatpush2.msra.mxu0 0.0
        %419 = vmatprep.subr.mxu0 0.0
        %420 = vmatpush2.msra.mxu0 0.0
        %421 = vmatprep.subr.mxu0 0.0
        %422 = vmatpush2.msra.mxu0 0.0
        %423 = vmatprep.subr.mxu0 0.0
        %424 = vmatpush2.msra.mxu0 0.0
        %425 = vmatprep.subr.mxu0 0.0
        %426 = vmatpush2.msra.mxu0 0.0
        %427 = vmatprep.subr.mxu0 0.0
        %428 = vmatpush2.msra.mxu0 0.0
        %429 = vmatprep.subr.mxu0 0.0
        %430 = vmatpush2.msra.mxu0 0.0
        %431 = vmatprep.subr.mxu0 0.0
        %432 = vmatpush2.msra.mxu0 0.0
        %433 = vmatprep.subr.mxu0 0.0
        %434 = vmatpush2.msra.mxu0 0.0
        %435 = vmatprep.subr.mxu0 0.0
        %436 = vmatpush2.msra.mxu0 0.0
        %437 = vmatprep.subr.mxu0 0.0
        %438 = vmatpush2.msra.mxu0 0.0
        %439 = vmatprep.subr.mxu0 0.0
        %440 = vmatpush2.msra.mxu0 0.0
        %441 = vmatprep.mubr.f32.mxu0 0.0
        %442 = vmatmul.mubr.f32.gmra.mxu0 %v354
        %v443 = vpop.f32.mrf.mxu0
        %v444 = vadd.f32 %v315, %v443
        %v445 = vpop.f32.mrf.mxu0
        %446 = vmatprep.mubr.f32.mxu0 0.0
        %447 = vmatmul.mubr.f32.gmra.mxu0 %v357
        %v448 = vpop.f32.mrf.mxu0
        %v449 = vadd.f32 %v320, %v448
        %v450 = vpop.f32.mrf.mxu0
        %451 = vmatprep.mubr.f32.mxu0 0.0
        %452 = vmatmul.mubr.f32.gmra.mxu0 %v360
        %v453 = vpop.f32.mrf.mxu0
        %v454 = vadd.f32 %v325, %v453
        %v455 = vpop.f32.mrf.mxu0
        %456 = vmatprep.mubr.f32.mxu0 0.0
        %457 = vmatmul.mubr.f32.gmra.mxu0 %v363
        %v458 = vpop.f32.mrf.mxu0
        %v459 = vadd.f32 %v330, %v458
        %v460 = vpop.f32.mrf.mxu0
        %461 = vmatprep.mubr.f32.mxu0 0.0
        %462 = vmatmul.mubr.f32.gmra.mxu0 %v366
        %v463 = vpop.f32.mrf.mxu0
        %v464 = vadd.f32 %v335, %v463
        %v465 = vpop.f32.mrf.mxu0
        %466 = vmatprep.mubr.f32.mxu0 0.0
        %467 = vmatmul.mubr.f32.gmra.mxu0 %v369
        %v468 = vpop.f32.mrf.mxu0
        %v469 = vadd.f32 %v340, %v468
        %v470 = vpop.f32.mrf.mxu0
        %471 = vmatprep.mubr.f32.mxu0 0.0
        %472 = vmatmul.mubr.f32.gmra.mxu0 %v372
        %v473 = vpop.f32.mrf.mxu0
        %v474 = vadd.f32 %v345, %v473
        %v475 = vpop.f32.mrf.mxu0
        %476 = vmatprep.mubr.f32.mxu0 0.0
        %477 = vmatmul.mubr.f32.gmra.mxu0 %v375
        %v478 = vpop.f32.mrf.mxu0
        %v479 = vadd.f32 %v350, %v478
        %v480 = vpop.f32.mrf.mxu0
        %481 = vdwg.mxu0
        %v482 = vmax.f32 %v444, 0.0
        %v483 = vmax.f32 %v449, 0.0
        %v484 = vmax.f32 %v454, 0.0
        %v485 = vmax.f32 %v459, 0.0
        %v486 = vmax.f32 %v464, 0.0
        %v487 = vmax.f32 %v469, 0.0
        %v488 = vmax.f32 %v474, 0.0
        %v489 = vmax.f32 %v479, 0.0
        %v490 = vmin.f32 %v482, 6.0
        %v491 = vmin.f32 %v483, 6.0
        %v492 = vmin.f32 %v484, 6.0
        %v493 = vmin.f32 %v485, 6.0
        %v494 = vmin.f32 %v486, 6.0
        %v495 = vmin.f32 %v487, 6.0
        %v496 = vmin.f32 %v488, 6.0
        %v497 = vmin.f32 %v489, 6.0
        %v498 = vld [vmem:[%s4] sm:$0xff]
        %v499 = vld [vmem:[%s4 + $0x8] sm:$0xff]
        %v500 = vld [vmem:[%s4 + $0x10] sm:$0xff]
        %v501 = vld [vmem:[%s4 + $0x18] sm:$0xff]
        %503 = vset.pattern.permute.xlu0 0
        %504 = vperm.xlu0 %503, %v498
        %v505 = vpop.permute.xlu0 %504
        %508 = vset.pattern.permute.xlu0 0
        %509 = vperm.xlu0 %508, %v499
        %v510 = vpop.permute.xlu0 %509
        %513 = vset.pattern.permute.xlu0 0
        %514 = vperm.xlu0 %513, %v500
        %v515 = vpop.permute.xlu0 %514
        %518 = vset.pattern.permute.xlu0 0
        %519 = vperm.xlu0 %518, %v501
        %v520 = vpop.permute.xlu0 %519
        %vm522 = vcmask 523264
        %v524 = vsel %vm522, %v296, 0
        %v527 = vsel %vm522, %v297, 0
        %v530 = vsel %vm522, %v298, 0
        %v533 = vsel %vm522, %v299, 0
        %535 = vmatprep.subr.mxu0 0.0
        %536 = vmatpush1.msra.mxu0 0.0
        %537 = vmatprep.subr.mxu0 0.0
        %538 = vmatpush1.msra.mxu0 0.0
        %539 = vmatprep.subr.mxu0 0.0
        %540 = vmatpush1.msra.mxu0 0.0
        %541 = vmatprep.subr.mxu0 0.0
        %542 = vmatpush1.msra.mxu0 0.0
        %543 = vmatprep.subr.mxu0 0.0
        %544 = vmatpush1.msra.mxu0 0.0
        %545 = vmatprep.subr.mxu0 0.0
        %546 = vmatpush1.msra.mxu0 0.0
        %547 = vmatprep.subr.mxu0 0.0
        %548 = vmatpush1.msra.mxu0 0.0
        %549 = vmatprep.subr.mxu0 0.0
        %550 = vmatpush1.msra.mxu0 0.0
        %551 = vmatprep.subr.mxu0 0.0
        %552 = vmatpush1.msra.mxu0 %v497
        %553 = vmatprep.subr.mxu0 0.0
        %554 = vmatpush1.msra.mxu0 %v496
        %555 = vmatprep.subr.mxu0 0.0
        %556 = vmatpush1.msra.mxu0 %v495
        %557 = vmatprep.subr.mxu0 0.0
        %558 = vmatpush1.msra.mxu0 %v494
        %559 = vmatprep.subr.mxu0 0.0
        %560 = vmatpush1.msra.mxu0 %v493
        %561 = vmatprep.subr.mxu0 0.0
        %562 = vmatpush1.msra.mxu0 %v492
        %563 = vmatprep.subr.mxu0 0.0
        %564 = vmatpush1.msra.mxu0 %v491
        %565 = vmatprep.subr.mxu0 0.0
        %566 = vmatpush1.msra.mxu0 %v490
        %567 = vmatprep.subr.mxu0 0.0
        %568 = vmatpush2.msra.mxu0 0.0
        %569 = vmatprep.subr.mxu0 0.0
        %570 = vmatpush2.msra.mxu0 0.0
        %571 = vmatprep.subr.mxu0 0.0
        %572 = vmatpush2.msra.mxu0 0.0
        %573 = vmatprep.subr.mxu0 0.0
        %574 = vmatpush2.msra.mxu0 0.0
        %575 = vmatprep.subr.mxu0 0.0
        %576 = vmatpush2.msra.mxu0 0.0
        %577 = vmatprep.subr.mxu0 0.0
        %578 = vmatpush2.msra.mxu0 0.0
        %579 = vmatprep.subr.mxu0 0.0
        %580 = vmatpush2.msra.mxu0 0.0
        %581 = vmatprep.subr.mxu0 0.0
        %582 = vmatpush2.msra.mxu0 0.0
        %583 = vmatprep.subr.mxu0 0.0
        %584 = vmatpush2.msra.mxu0 0.0
        %585 = vmatprep.subr.mxu0 0.0
        %586 = vmatpush2.msra.mxu0 0.0
        %587 = vmatprep.subr.mxu0 0.0
        %588 = vmatpush2.msra.mxu0 0.0
        %589 = vmatprep.subr.mxu0 0.0
        %590 = vmatpush2.msra.mxu0 0.0
        %591 = vmatprep.subr.mxu0 0.0
        %592 = vmatpush2.msra.mxu0 0.0
        %593 = vmatprep.subr.mxu0 0.0
        %594 = vmatpush2.msra.mxu0 0.0
        %595 = vmatprep.subr.mxu0 0.0
        %596 = vmatpush2.msra.mxu0 0.0
        %597 = vmatprep.subr.mxu0 0.0
        %598 = vmatpush2.msra.mxu0 0.0
        %599 = vmatprep.mubr.f32.mxu0 0.0
        %600 = vmatmul.mubr.f32.gmra.mxu0 %v524
        %v601 = vpop.f32.mrf.mxu0
        %v602 = vadd.f32 %v505, %v601
        %v603 = vpop.f32.mrf.mxu0
        %604 = vmatprep.mubr.f32.mxu0 0.0
        %605 = vmatmul.mubr.f32.gmra.mxu0 %v527
        %v606 = vpop.f32.mrf.mxu0
        %v607 = vadd.f32 %v510, %v606
        %v608 = vpop.f32.mrf.mxu0
        %609 = vmatprep.mubr.f32.mxu0 0.0
        %610 = vmatmul.mubr.f32.gmra.mxu0 %v530
        %v611 = vpop.f32.mrf.mxu0
        %v612 = vadd.f32 %v515, %v611
        %v613 = vpop.f32.mrf.mxu0
        %614 = vmatprep.mubr.f32.mxu0 0.0
        %615 = vmatmul.mubr.f32.gmra.mxu0 %v533
        %v616 = vpop.f32.mrf.mxu0
        %v617 = vadd.f32 %v520, %v616
        %v618 = vpop.f32.mrf.mxu0
        %619 = vdwg.mxu0
        %620 = vst [vmem:[%s287] sm:$0xff] %v602
        %621 = vst [vmem:[%s287 + $0x8] sm:$0xff] %v607
        %622 = vst [vmem:[%s287 + $0x10] sm:$0xff] %v612
        %623 = vst [vmem:[%s287 + $0x18] sm:$0xff] %v617
        %s624 = sand.u32 %s153, 1
        %s625 = scalar_lea.sflag [#allocation4], %s624
        %s626 = sand.u32 %s153, 1
        %s627 = smul.addr %s626, 32
        %s628 = scalar_lea.vmem [#allocation3], %s627
        // Predicated region
        $region79: #{tpu_custom_call.1} parent=73 // pred_check
          %p629 = pneg %p163
        $region80: #{tpu_custom_call.1} parent=73 // pred_check_branch
          %631 = sbr.rel (%p629) target = $region82
        $region81: #{tpu_custom_call.1} parent=73 // pred_region
          %s633 = ssub.s32 512, 512
          %634 = vsyncadd %s625, %s633
          %s635 = smul.addr %s23, 8
          %s636 = sadd.s32 %s24, %s635
          %s637 = smul.addr %s636, 128
          %s638 = scalar_lea.hbm %s5, %s637
          %s639 = sshll.u32 %s628, 4
          %s640 = int_to_ptr.vmem [resolvable:$true] %s639
          %645 = dma.vmem_to_hbm [thread:$0]  %s640, 512, %s638, %s625, 128, 256, 8
        $region82: #{tpu_custom_call.1} parent=73 // pred_fallthru
          _
      $region74: #{tpu_custom_call.1} parent=5 // pred_fallthru
        _
      %p646 = scmp.le.s32.totalorder 2, %s14
      // Predicated region
      $region83: #{tpu_custom_call.1} parent=5 // pred_check
        %p647 = pneg %p646
      $region84: #{tpu_custom_call.1} parent=5 // pred_check_branch
        %649 = sbr.rel (%p647) target = $region86
      $region85: #{tpu_custom_call.1} parent=5 // pred_region
        %s650 = ssub.s32 %s14, 2
        // Predicated region
        $region87: #{tpu_custom_call.1} parent=85 // pred_check
          %p651 = pneg %p169
        $region88: #{tpu_custom_call.1} parent=85 // pred_check_branch
          %653 = sbr.rel (%p651) target = $region90
        $region89: #{tpu_custom_call.1} parent=85 // pred_region
          %s654 = sand.u32 %s154, 1
          %s655 = scalar_lea.sflag [#allocation4], %s654
          %s656 = sand.u32 %s154, 1
          %s657 = smul.addr %s656, 32
          %s658 = scalar_lea.vmem [#allocation3], %s657
          %659 = dma.done %s655, 512
        $region90: #{tpu_custom_call.1} parent=85 // pred_fallthru
          _
      $region86: #{tpu_custom_call.1} parent=5 // pred_fallthru
        _
    $region6: #{tpu_custom_call.1} parent=1 // loop_footer
      %s18 = sadd.s32 1, %s14
    $region7: #{tpu_custom_call.1} parent=1 // loop_footer_branch
      %13 = sbr.rel target = $region3
    $region8: #{tpu_custom_call.1} parent=1 // loop_exit
      _
    %660 = vsyncpa [#allocation4], 1
    %s661 = scalar_lea.sflag [#allocation4], 1
    %662 = vsyncpa %s661, 1

</llo_original>
